<compile_context>
chip_gen: v7x
topology: tpu7x:2x2x1
jax: 0.10.0
libtpu: 0.0.40
codegen_flags: <defaults>
</compile_context>

<pallas_src>
import jax
import jax.numpy as jnp
import numpy as np
from jax.experimental import pallas as pl
from jax.experimental.pallas import tpu as pltpu

K = 4          # deconv kernel size
STRIDE = 2
PAD = 1
BN_EPS = 1e-5


def _vmem_capacity_bytes():
    try:
        return int(pltpu.get_tpu_info().vmem_capacity_bytes)
    except Exception:
        return 64 * 1024 * 1024          # conservative: v7x per-TC physical VMEM


_VMEM_CAP = _vmem_capacity_bytes()
# Leave headroom under physical VMEM (v7x: 64 MiB, v5e/v6e: 128 MiB).
_VMEM_LIMIT = int(min(_VMEM_CAP * 0.78, 100 * 1024 * 1024))
_TILE_BUDGET = int(_VMEM_LIMIT * 0.80)


def ds_basic_deconv_forward(x, w_dw, b_dw, w_pw, b_pw, gamma, beta):
    """x: (N, C, H, W) NCHW float32; same contract as the PyTorch module."""
    N, C, H, W = x.shape
    O = w_pw.shape[0]
    Ho = (H - 1) * STRIDE - 2 * PAD + K          # = 2H
    Wo = (W - 1) * STRIDE - 2 * PAD + K          # = 2W
    Lp = (W + 2) * C                             # padded-width lanes (input)
    Wc = W * C                                   # valid-width lanes (input)
    WO = W * O                                   # lanes of the fused output

    # ---- pointwise lane-chunking: bound the kron block so MXU waste / VMEM
    #      stay O(Wt) instead of O(W). At the test shape Wt == W (one chunk).
    Wt = W
    if W * C > 512:
        for cand in range(W, 0, -1):
            if W % cand == 0 and cand * C <= 512:
                Wt = cand
                break
    nW = W // Wt
    WtC, WtO = Wt * C, Wt * O

    # ---- tile selection against the per-generation VMEM budget -------------
    def step_vmem_bytes(th):
        inp = 2 * (th + 2) * Lp                      # double-buffered input block
        outs = 2 * (4 * th * WO + 8 * WO)            # double-buffered outputs
        consts = 2 * (16 * Wc + WtC * WtO)           # tap weights + pw block
        temps = 9 * th * Wc + 2 * th * Wc + 3 * th * WO   # windows / acc / y slack
        return 4 * (inp + outs + consts + temps)

    cap = min(H, 256)
    cands = sorted({t for t in range(8, cap + 1, 8) if H % t == 0}
                   | ({H} if H <= 256 else set()), reverse=True)
    if not cands:
        cands = [H]                                  # full-dim block is always legal
    TH = cands[-1]
    for t in cands:
        if step_vmem_bytes(t) <= _TILE_BUDGET:
            TH = t
            break
    # keep >= 2 grid steps so v7x's two TensorCores both get work
    if N * (H // TH) < 2 and TH == H and H % 16 == 0:
        TH = H // 2
    nT = H // TH

    # ---- glue (XLA): layout prep & weight pre-tiling ------------------------
    x_nhwc = jnp.transpose(x, (0, 2, 3, 1))                       # (N,H,W,C)
    xp = jnp.pad(x_nhwc, ((0, 0), (1, 1), (1, 1), (0, 0))).reshape(N, H + 2, Lp)
    if nT == 1:
        x_tiles = xp.reshape(N, 1, H + 2, Lp)                     # free reshape
    else:
        x_tiles = jnp.stack(
            [xp[:, t * TH:t * TH + TH + 2, :] for t in range(nT)], axis=1)

    # depthwise tap weights of the 4-phase (sub-pixel) decomposition, tiled to
    # W*C lanes: row (2*dy+dx)*4 + 2*a + b, lane i*C+c = w_dw[c, 3-dy-2a, 3-dx-2b]
    w4 = w_dw[:, 0, :, :]                                         # (C, K, K)
    rows = []
    for dy in range(2):
        for dx in range(2):
            for a in range(2):
                for b in range(2):
                    rows.append(jnp.tile(w4[:, 3 - dy - 2 * a, 3 - dx - 2 * b], W))
    wtap = jnp.stack(rows).astype(jnp.float32)                    # (16, W*C)

    # 1x1 conv as a block-diagonal matmul over Wt-wide lane chunks
    w_pw_mat = w_pw[:, :, 0, 0].T.astype(jnp.float32)             # (C, O)
    wbig = jnp.kron(jnp.eye(Wt, dtype=jnp.float32), w_pw_mat)     # (Wt*C, Wt*O)

    # ---- fused kernel: 4-phase depthwise deconv + 1x1 conv + partial stats --
    def fused_kernel(x_ref, wtap_ref, wbig_ref, y_ref, stat_ref):
        xs = x_ref[0, 0]                                          # (TH+2, Lp)
        # 9 (row, col)-shifted windows, each (TH, W*C), computed once & reused
        win = [[xs[r:r + TH, s * C:s * C + Wc] for s in range(3)] for r in range(3)]
        wbig_v = wbig_ref[...]                                    # (WtC, WtO)
        ssum = jnp.zeros((1, WO), jnp.float32)
        ssq = jnp.zeros((1, WO), jnp.float32)
        for dy in range(2):
            for dx in range(2):
                phase = 2 * dy + dx
                acc = jnp.zeros((TH, Wc), jnp.float32)
                for a in range(2):
                    for b in range(2):
                        k = phase * 4 + 2 * a + b
                        acc = acc + win[dy + a][dx + b] * wtap_ref[k:k + 1, :]
                # pointwise (1x1) conv: MXU matmul(s), lane-dense (TH, W*O) out
                if nW == 1:
                    y_nb = jnp.dot(acc, wbig_v, preferred_element_type=jnp.float32)
                else:
                    y_nb = jnp.concatenate(
                        [jnp.dot(acc[:, j * WtC:(j + 1) * WtC], wbig_v,
                                 preferred_element_type=jnp.float32)
                         for j in range(nW)], axis=-1)
                # bias-free output: the deconv/pointwise biases cancel inside
                # training-mode BatchNorm, so they never need to be added.
                y_ref[0, dy, dx] = y_nb
                ssum = ssum + jnp.sum(y_nb, axis=0, keepdims=True)
                ssq = ssq + jnp.sum(y_nb * y_nb, axis=0, keepdims=True)
        # single full (8, WO) store (no 1-sublane masked writes)
        stat_ref[0, 0] = jnp.concatenate(
            [ssum, ssq, jnp.zeros((6, WO), jnp.float32)], axis=0)

    y_sep, stats = pl.pallas_call(
        fused_kernel,
        grid=(N, nT),
        in_specs=[
            pl.BlockSpec((1, 1, TH + 2, Lp), lambda n, t: (n, t, 0, 0)),
            pl.BlockSpec((16, Wc), lambda n, t: (0, 0)),
            pl.BlockSpec((WtC, WtO), lambda n, t: (0, 0)),
        ],
        out_specs=(
            pl.BlockSpec((1, 2, 2, TH, WO), lambda n, t: (n, 0, 0, t, 0)),
            pl.BlockSpec((1, 1, 8, WO), lambda n, t: (n, t, 0, 0)),
        ),
        out_shape=(
            jax.ShapeDtypeStruct((N, 2, 2, H, WO), jnp.float32),
            jax.ShapeDtypeStruct((N, nT, 8, WO), jnp.float32),
        ),
        compiler_params=pltpu.CompilerParams(
            dimension_semantics=("parallel", "parallel"),
            vmem_limit_bytes=_VMEM_LIMIT),
    )(x_tiles, wtap, wbig)

    # ---- tiny global BN-stat reduce (correct under tiling) ------------------
    stat = stats[:, :, 0:2, :].sum(axis=(0, 1))                   # (2, WO)
    stat_co = stat.reshape(2, W, O).sum(axis=1)                   # (2, O)
    count = jnp.float32(N * Ho * Wo)
    mean_nb = stat_co[0] / count                                  # bias-shifted mean
    var = stat_co[1] / count - mean_nb * mean_nb                  # biased variance
    inv_std = jax.lax.rsqrt(var + BN_EPS)
    scale = gamma * inv_std
    shift = beta - mean_nb * scale
    # NOTE: b_dw / b_pw only shift each channel by a constant, which training-
    # mode BatchNorm removes again, so they do not appear in the forward output.

    # ---- BN apply + ReLU fused (by XLA) into the required NCHW transpose ----
    z6 = y_sep.reshape(N, 2, 2, H, W, O)                          # (n, dy, dx, j, i, o)
    z6 = jnp.maximum(z6 * scale + shift, 0.0)
    out = jnp.transpose(z6, (0, 5, 3, 1, 4, 2))                   # (n, o, j, dy, i, dx)
    return out.reshape(N, O, Ho, Wo)


# ----------------------------------------------------------------------------
# Pure-JAX reference (NCHW, zero-dilation formulation) for correctness check.
# ----------------------------------------------------------------------------
def _reference(x, w_dw, b_dw, w_pw, b_pw, gamma, beta):
    N, C, H, W = x.shape
    Ho = (H - 1) * STRIDE - 2 * PAD + K
    Wo = (W - 1) * STRIDE - 2 * PAD + K
    Hd, Wd = (H - 1) * STRIDE + 1, (W - 1) * STRIDE + 1
    x_dil = jnp.zeros((N, C, Hd, Wd), x.dtype).at[:, :, ::STRIDE, ::STRIDE].set(x)
    pad = K - 1 - PAD
    x_up = jnp.pad(x_dil, ((0, 0), (0, 0), (pad, pad), (pad, pad)))
    w_flip = w_dw[:, 0, ::-1, ::-1]                     # (C, K, K)
    acc = jnp.zeros((N, C, Ho, Wo), jnp.float32)
    for kh in range(K):
        for kw in range(K):
            acc = acc + x_up[:, :, kh:kh + Ho, kw:kw + Wo] * w_flip[:, kh, kw][None, :, None, None]
    acc = acc + b_dw[None, :, None, None]
    y = jnp.einsum('oc,nchw->nohw', w_pw[:, :, 0, 0], acc,
                   precision=jax.lax.Precision.HIGHEST) + b_pw[None, :, None, None]
    mean = y.mean(axis=(0, 2, 3), keepdims=True)
    var = jnp.square(y - mean).mean(axis=(0, 2, 3), keepdims=True)
    z = (y - mean) / jnp.sqrt(var + BN_EPS)
    z = z * gamma[None, :, None, None] + beta[None, :, None, None]
    return jnp.maximum(z, 0.0)


if __name__ == "__main__":
    # small shapes consistent with the module: NCHW input
    N, C_IN, C_OUT, H, W = 2, 4, 8, 16, 16

    key = jax.random.PRNGKey(0)
    k1, k2, k3, k4, k5, k6 = jax.random.split(key, 6)
    x = jax.random.normal(k1, (N, C_IN, H, W), jnp.float32)

    w_dw = 0.2 * jax.random.normal(k2, (C_IN, 1, K, K), jnp.float32)      # ConvTranspose2d weight
    b_dw = 0.1 * jax.random.normal(k3, (C_IN,), jnp.float32)              # ConvTranspose2d bias
    w_pw = 0.2 * jax.random.normal(k4, (C_OUT, C_IN, 1, 1), jnp.float32)  # 1x1 Conv2d weight
    b_pw = 0.1 * jax.random.normal(k5, (C_OUT,), jnp.float32)             # 1x1 Conv2d bias
    gamma = jnp.ones((C_OUT,), jnp.float32) + 0.1 * jax.random.normal(k6, (C_OUT,), jnp.float32)
    beta = jnp.zeros((C_OUT,), jnp.float32)
    # TODO(synk): BatchNorm running-stat buffer updates (training-side state) are
    # not modeled; only the forward output is reproduced.

    out = jax.jit(ds_basic_deconv_forward)(x, w_dw, b_dw, w_pw, b_pw, gamma, beta)
    out = jax.block_until_ready(out)

    assert out.shape == (N, C_OUT, 2 * H, 2 * W), out.shape
    ref = _reference(x, w_dw, b_dw, w_pw, b_pw, gamma, beta)
    np.testing.assert_allclose(np.asarray(out), np.asarray(ref), rtol=1e-4, atol=1e-4)

    print("KERNEL_OK")
</pallas_src>

<mosaic_0001>
module attributes {stable_mosaic.version = 11 : i64} {
  func.func @fused_kernel(%arg0: i32, %arg1: i32, %arg2: memref<1x1x18x72xf32, #tpu.memory_space<vmem>>, %arg3: memref<16x64xf32, #tpu.memory_space<vmem>>, %arg4: memref<64x128xf32, #tpu.memory_space<vmem>>, %arg5: memref<1x2x2x16x128xf32, #tpu.memory_space<vmem>>, %arg6: memref<1x1x8x128xf32, #tpu.memory_space<vmem>>) attributes {dimension_semantics = [#tpu.dimension_semantics<parallel>, #tpu.dimension_semantics<parallel>], iteration_bounds = array<i64: 2, 1>, scalar_prefetch = 0 : i64, scratch_operands = 0 : i64, tpu.core_type = #tpu.core_type<tc>, window_params = [{transform_indices = @transform_0, window_bounds = array<i64: 1, 1, 18, 72>}, {pipeline_mode = #tpu.pipeline_mode<synchronous>, transform_indices = @transform_1, window_bounds = array<i64: 16, 64>}, {pipeline_mode = #tpu.pipeline_mode<synchronous>, transform_indices = @transform_2, window_bounds = array<i64: 64, 128>}, {transform_indices = @transform_3, window_bounds = array<i64: 1, 2, 2, 16, 128>}, {transform_indices = @transform_4, window_bounds = array<i64: 1, 1, 8, 128>}]} {
    %c0 = arith.constant 0 : index
    %c0_0 = arith.constant 0 : index
    %c0_1 = arith.constant 0 : index
    %c0_2 = arith.constant 0 : index
    %0 = vector.load %arg2[%c0, %c0_0, %c0_1, %c0_2] : memref<1x1x18x72xf32, #tpu.memory_space<vmem>>, vector<1x1x18x72xf32>
    %1 = vector.shape_cast %0 : vector<1x1x18x72xf32> to vector<18x72xf32>
    %2 = vector.extract_strided_slice %1 {offsets = [0, 0], sizes = [16, 64], strides = [1, 1]} : vector<18x72xf32> to vector<16x64xf32>
    %3 = vector.extract_strided_slice %1 {offsets = [0, 4], sizes = [16, 64], strides = [1, 1]} : vector<18x72xf32> to vector<16x64xf32>
    %4 = vector.extract_strided_slice %1 {offsets = [0, 8], sizes = [16, 64], strides = [1, 1]} : vector<18x72xf32> to vector<16x64xf32>
    %5 = vector.extract_strided_slice %1 {offsets = [1, 0], sizes = [16, 64], strides = [1, 1]} : vector<18x72xf32> to vector<16x64xf32>
    %6 = vector.extract_strided_slice %1 {offsets = [1, 4], sizes = [16, 64], strides = [1, 1]} : vector<18x72xf32> to vector<16x64xf32>
    %7 = vector.extract_strided_slice %1 {offsets = [1, 8], sizes = [16, 64], strides = [1, 1]} : vector<18x72xf32> to vector<16x64xf32>
    %8 = vector.extract_strided_slice %1 {offsets = [2, 0], sizes = [16, 64], strides = [1, 1]} : vector<18x72xf32> to vector<16x64xf32>
    %9 = vector.extract_strided_slice %1 {offsets = [2, 4], sizes = [16, 64], strides = [1, 1]} : vector<18x72xf32> to vector<16x64xf32>
    %10 = vector.extract_strided_slice %1 {offsets = [2, 8], sizes = [16, 64], strides = [1, 1]} : vector<18x72xf32> to vector<16x64xf32>
    %c0_3 = arith.constant 0 : index
    %c0_4 = arith.constant 0 : index
    %11 = vector.load %arg4[%c0_3, %c0_4] : memref<64x128xf32, #tpu.memory_space<vmem>>, vector<64x128xf32>
    %cst = arith.constant 0.000000e+00 : f32
    %12 = vector.broadcast %cst : f32 to vector<1x128xf32>
    %cst_5 = arith.constant 0.000000e+00 : f32
    %13 = vector.broadcast %cst_5 : f32 to vector<1x128xf32>
    %cst_6 = arith.constant 0.000000e+00 : f32
    %14 = vector.broadcast %cst_6 : f32 to vector<16x64xf32>
    %c0_7 = arith.constant 0 : index
    %c0_8 = arith.constant 0 : index
    %15 = vector.load %arg3[%c0_7, %c0_8] : memref<16x64xf32, #tpu.memory_space<vmem>>, vector<1x64xf32>
    %16 = vector.broadcast %15 : vector<1x64xf32> to vector<16x64xf32>
    %17 = arith.mulf %2, %16 : vector<16x64xf32>
    %18 = arith.addf %14, %17 : vector<16x64xf32>
    %c1 = arith.constant 1 : index
    %c0_9 = arith.constant 0 : index
    %19 = vector.load %arg3[%c1, %c0_9] : memref<16x64xf32, #tpu.memory_space<vmem>>, vector<1x64xf32>
    %20 = vector.broadcast %19 : vector<1x64xf32> to vector<16x64xf32>
    %21 = arith.mulf %3, %20 : vector<16x64xf32>
    %22 = arith.addf %18, %21 : vector<16x64xf32>
    %c2 = arith.constant 2 : index
    %c0_10 = arith.constant 0 : index
    %23 = vector.load %arg3[%c2, %c0_10] : memref<16x64xf32, #tpu.memory_space<vmem>>, vector<1x64xf32>
    %24 = vector.broadcast %23 : vector<1x64xf32> to vector<16x64xf32>
    %25 = arith.mulf %5, %24 : vector<16x64xf32>
    %26 = arith.addf %22, %25 : vector<16x64xf32>
    %c3 = arith.constant 3 : index
    %c0_11 = arith.constant 0 : index
    %27 = vector.load %arg3[%c3, %c0_11] : memref<16x64xf32, #tpu.memory_space<vmem>>, vector<1x64xf32>
    %28 = vector.broadcast %27 : vector<1x64xf32> to vector<16x64xf32>
    %29 = arith.mulf %6, %28 : vector<16x64xf32>
    %30 = arith.addf %26, %29 : vector<16x64xf32>
    %cst_12 = arith.constant dense<0.000000e+00> : vector<16x128xf32>
    %31 = tpu.matmul %30, %11, %cst_12 {dimension_numbers = #tpu.dot_dimension_numbers<[1], [0], [0], [1], [0, 0, 1, 1], [], []>} : vector<16x64xf32>, vector<64x128xf32>, vector<16x128xf32> -> vector<16x128xf32>
    %c0_13 = arith.constant 0 : index
    %c0_14 = arith.constant 0 : index
    %c0_15 = arith.constant 0 : index
    %c0_16 = arith.constant 0 : index
    %c0_17 = arith.constant 0 : index
    %32 = vector.load %arg5[%c0_13, %c0_14, %c0_15, %c0_16, %c0_17] : memref<1x2x2x16x128xf32, #tpu.memory_space<vmem>>, vector<1x1x1x16x128xf32>
    %33 = vector.shape_cast %32 : vector<1x1x1x16x128xf32> to vector<16x128xf32>
    %34 = vector.shape_cast %31 : vector<16x128xf32> to vector<1x1x1x16x128xf32>
    tpu.vector_store %arg5[%c0_13, %c0_14, %c0_15, %c0_16, %c0_17], %34 {strides = array<i32>} : memref<1x2x2x16x128xf32, #tpu.memory_space<vmem>>, vector<1x1x1x16x128xf32>,
    %cst_18 = arith.constant dense<0.000000e+00> : vector<128xf32>
    %35 = vector.multi_reduction <add>, %31, %cst_18 [0] : vector<16x128xf32> to vector<128xf32>
    %36 = vector.shape_cast %35 : vector<128xf32> to vector<1x128xf32>
    %37 = arith.addf %12, %36 : vector<1x128xf32>
    %38 = arith.mulf %31, %31 : vector<16x128xf32>
    %cst_19 = arith.constant dense<0.000000e+00> : vector<128xf32>
    %39 = vector.multi_reduction <add>, %38, %cst_19 [0] : vector<16x128xf32> to vector<128xf32>
    %40 = vector.shape_cast %39 : vector<128xf32> to vector<1x128xf32>
    %41 = arith.addf %13, %40 : vector<1x128xf32>
    %cst_20 = arith.constant 0.000000e+00 : f32
    %42 = vector.broadcast %cst_20 : f32 to vector<16x64xf32>
    %c4 = arith.constant 4 : index
    %c0_21 = arith.constant 0 : index
    %43 = vector.load %arg3[%c4, %c0_21] : memref<16x64xf32, #tpu.memory_space<vmem>>, vector<1x64xf32>
    %44 = vector.broadcast %43 : vector<1x64xf32> to vector<16x64xf32>
    %45 = arith.mulf %3, %44 : vector<16x64xf32>
    %46 = arith.addf %42, %45 : vector<16x64xf32>
    %c5 = arith.constant 5 : index
    %c0_22 = arith.constant 0 : index
    %47 = vector.load %arg3[%c5, %c0_22] : memref<16x64xf32, #tpu.memory_space<vmem>>, vector<1x64xf32>
    %48 = vector.broadcast %47 : vector<1x64xf32> to vector<16x64xf32>
    %49 = arith.mulf %4, %48 : vector<16x64xf32>
    %50 = arith.addf %46, %49 : vector<16x64xf32>
    %c6 = arith.constant 6 : index
    %c0_23 = arith.constant 0 : index
    %51 = vector.load %arg3[%c6, %c0_23] : memref<16x64xf32, #tpu.memory_space<vmem>>, vector<1x64xf32>
    %52 = vector.broadcast %51 : vector<1x64xf32> to vector<16x64xf32>
    %53 = arith.mulf %6, %52 : vector<16x64xf32>
    %54 = arith.addf %50, %53 : vector<16x64xf32>
    %c7 = arith.constant 7 : index
    %c0_24 = arith.constant 0 : index
    %55 = vector.load %arg3[%c7, %c0_24] : memref<16x64xf32, #tpu.memory_space<vmem>>, vector<1x64xf32>
    %56 = vector.broadcast %55 : vector<1x64xf32> to vector<16x64xf32>
    %57 = arith.mulf %7, %56 : vector<16x64xf32>
    %58 = arith.addf %54, %57 : vector<16x64xf32>
    %cst_25 = arith.constant dense<0.000000e+00> : vector<16x128xf32>
    %59 = tpu.matmul %58, %11, %cst_25 {dimension_numbers = #tpu.dot_dimension_numbers<[1], [0], [0], [1], [0, 0, 1, 1], [], []>} : vector<16x64xf32>, vector<64x128xf32>, vector<16x128xf32> -> vector<16x128xf32>
    %c0_26 = arith.constant 0 : index
    %c0_27 = arith.constant 0 : index
    %c1_28 = arith.constant 1 : index
    %c0_29 = arith.constant 0 : index
    %c0_30 = arith.constant 0 : index
    %60 = vector.load %arg5[%c0_26, %c0_27, %c1_28, %c0_29, %c0_30] : memref<1x2x2x16x128xf32, #tpu.memory_space<vmem>>, vector<1x1x1x16x128xf32>
    %61 = vector.shape_cast %60 : vector<1x1x1x16x128xf32> to vector<16x128xf32>
    %62 = vector.shape_cast %59 : vector<16x128xf32> to vector<1x1x1x16x128xf32>
    tpu.vector_store %arg5[%c0_26, %c0_27, %c1_28, %c0_29, %c0_30], %62 {strides = array<i32>} : memref<1x2x2x16x128xf32, #tpu.memory_space<vmem>>, vector<1x1x1x16x128xf32>,
    %cst_31 = arith.constant dense<0.000000e+00> : vector<128xf32>
    %63 = vector.multi_reduction <add>, %59, %cst_31 [0] : vector<16x128xf32> to vector<128xf32>
    %64 = vector.shape_cast %63 : vector<128xf32> to vector<1x128xf32>
    %65 = arith.addf %37, %64 : vector<1x128xf32>
    %66 = arith.mulf %59, %59 : vector<16x128xf32>
    %cst_32 = arith.constant dense<0.000000e+00> : vector<128xf32>
    %67 = vector.multi_reduction <add>, %66, %cst_32 [0] : vector<16x128xf32> to vector<128xf32>
    %68 = vector.shape_cast %67 : vector<128xf32> to vector<1x128xf32>
    %69 = arith.addf %41, %68 : vector<1x128xf32>
    %cst_33 = arith.constant 0.000000e+00 : f32
    %70 = vector.broadcast %cst_33 : f32 to vector<16x64xf32>
    %c8 = arith.constant 8 : index
    %c0_34 = arith.constant 0 : index
    %71 = vector.load %arg3[%c8, %c0_34] : memref<16x64xf32, #tpu.memory_space<vmem>>, vector<1x64xf32>
    %72 = vector.broadcast %71 : vector<1x64xf32> to vector<16x64xf32>
    %73 = arith.mulf %5, %72 : vector<16x64xf32>
    %74 = arith.addf %70, %73 : vector<16x64xf32>
    %c9 = arith.constant 9 : index
    %c0_35 = arith.constant 0 : index
    %75 = vector.load %arg3[%c9, %c0_35] : memref<16x64xf32, #tpu.memory_space<vmem>>, vector<1x64xf32>
    %76 = vector.broadcast %75 : vector<1x64xf32> to vector<16x64xf32>
    %77 = arith.mulf %6, %76 : vector<16x64xf32>
    %78 = arith.addf %74, %77 : vector<16x64xf32>
    %c10 = arith.constant 10 : index
    %c0_36 = arith.constant 0 : index
    %79 = vector.load %arg3[%c10, %c0_36] : memref<16x64xf32, #tpu.memory_space<vmem>>, vector<1x64xf32>
    %80 = vector.broadcast %79 : vector<1x64xf32> to vector<16x64xf32>
    %81 = arith.mulf %8, %80 : vector<16x64xf32>
    %82 = arith.addf %78, %81 : vector<16x64xf32>
    %c11 = arith.constant 11 : index
    %c0_37 = arith.constant 0 : index
    %83 = vector.load %arg3[%c11, %c0_37] : memref<16x64xf32, #tpu.memory_space<vmem>>, vector<1x64xf32>
    %84 = vector.broadcast %83 : vector<1x64xf32> to vector<16x64xf32>
    %85 = arith.mulf %9, %84 : vector<16x64xf32>
    %86 = arith.addf %82, %85 : vector<16x64xf32>
    %cst_38 = arith.constant dense<0.000000e+00> : vector<16x128xf32>
    %87 = tpu.matmul %86, %11, %cst_38 {dimension_numbers = #tpu.dot_dimension_numbers<[1], [0], [0], [1], [0, 0, 1, 1], [], []>} : vector<16x64xf32>, vector<64x128xf32>, vector<16x128xf32> -> vector<16x128xf32>
    %c0_39 = arith.constant 0 : index
    %c1_40 = arith.constant 1 : index
    %c0_41 = arith.constant 0 : index
    %c0_42 = arith.constant 0 : index
    %c0_43 = arith.constant 0 : index
    %88 = vector.load %arg5[%c0_39, %c1_40, %c0_41, %c0_42, %c0_43] : memref<1x2x2x16x128xf32, #tpu.memory_space<vmem>>, vector<1x1x1x16x128xf32>
    %89 = vector.shape_cast %88 : vector<1x1x1x16x128xf32> to vector<16x128xf32>
    %90 = vector.shape_cast %87 : vector<16x128xf32> to vector<1x1x1x16x128xf32>
    tpu.vector_store %arg5[%c0_39, %c1_40, %c0_41, %c0_42, %c0_43], %90 {strides = array<i32>} : memref<1x2x2x16x128xf32, #tpu.memory_space<vmem>>, vector<1x1x1x16x128xf32>,
    %cst_44 = arith.constant dense<0.000000e+00> : vector<128xf32>
    %91 = vector.multi_reduction <add>, %87, %cst_44 [0] : vector<16x128xf32> to vector<128xf32>
    %92 = vector.shape_cast %91 : vector<128xf32> to vector<1x128xf32>
    %93 = arith.addf %65, %92 : vector<1x128xf32>
    %94 = arith.mulf %87, %87 : vector<16x128xf32>
    %cst_45 = arith.constant dense<0.000000e+00> : vector<128xf32>
    %95 = vector.multi_reduction <add>, %94, %cst_45 [0] : vector<16x128xf32> to vector<128xf32>
    %96 = vector.shape_cast %95 : vector<128xf32> to vector<1x128xf32>
    %97 = arith.addf %69, %96 : vector<1x128xf32>
    %cst_46 = arith.constant 0.000000e+00 : f32
    %98 = vector.broadcast %cst_46 : f32 to vector<16x64xf32>
    %c12 = arith.constant 12 : index
    %c0_47 = arith.constant 0 : index
    %99 = vector.load %arg3[%c12, %c0_47] : memref<16x64xf32, #tpu.memory_space<vmem>>, vector<1x64xf32>
    %100 = vector.broadcast %99 : vector<1x64xf32> to vector<16x64xf32>
    %101 = arith.mulf %6, %100 : vector<16x64xf32>
    %102 = arith.addf %98, %101 : vector<16x64xf32>
    %c13 = arith.constant 13 : index
    %c0_48 = arith.constant 0 : index
    %103 = vector.load %arg3[%c13, %c0_48] : memref<16x64xf32, #tpu.memory_space<vmem>>, vector<1x64xf32>
    %104 = vector.broadcast %103 : vector<1x64xf32> to vector<16x64xf32>
    %105 = arith.mulf %7, %104 : vector<16x64xf32>
    %106 = arith.addf %102, %105 : vector<16x64xf32>
    %c14 = arith.constant 14 : index
    %c0_49 = arith.constant 0 : index
    %107 = vector.load %arg3[%c14, %c0_49] : memref<16x64xf32, #tpu.memory_space<vmem>>, vector<1x64xf32>
    %108 = vector.broadcast %107 : vector<1x64xf32> to vector<16x64xf32>
    %109 = arith.mulf %9, %108 : vector<16x64xf32>
    %110 = arith.addf %106, %109 : vector<16x64xf32>
    %c15 = arith.constant 15 : index
    %c0_50 = arith.constant 0 : index
    %111 = vector.load %arg3[%c15, %c0_50] : memref<16x64xf32, #tpu.memory_space<vmem>>, vector<1x64xf32>
    %112 = vector.broadcast %111 : vector<1x64xf32> to vector<16x64xf32>
    %113 = arith.mulf %10, %112 : vector<16x64xf32>
    %114 = arith.addf %110, %113 : vector<16x64xf32>
    %cst_51 = arith.constant dense<0.000000e+00> : vector<16x128xf32>
    %115 = tpu.matmul %114, %11, %cst_51 {dimension_numbers = #tpu.dot_dimension_numbers<[1], [0], [0], [1], [0, 0, 1, 1], [], []>} : vector<16x64xf32>, vector<64x128xf32>, vector<16x128xf32> -> vector<16x128xf32>
    %c0_52 = arith.constant 0 : index
    %c1_53 = arith.constant 1 : index
    %c1_54 = arith.constant 1 : index
    %c0_55 = arith.constant 0 : index
    %c0_56 = arith.constant 0 : index
    %116 = vector.load %arg5[%c0_52, %c1_53, %c1_54, %c0_55, %c0_56] : memref<1x2x2x16x128xf32, #tpu.memory_space<vmem>>, vector<1x1x1x16x128xf32>
    %117 = vector.shape_cast %116 : vector<1x1x1x16x128xf32> to vector<16x128xf32>
    %118 = vector.shape_cast %115 : vector<16x128xf32> to vector<1x1x1x16x128xf32>
    tpu.vector_store %arg5[%c0_52, %c1_53, %c1_54, %c0_55, %c0_56], %118 {strides = array<i32>} : memref<1x2x2x16x128xf32, #tpu.memory_space<vmem>>, vector<1x1x1x16x128xf32>,
    %cst_57 = arith.constant dense<0.000000e+00> : vector<128xf32>
    %119 = vector.multi_reduction <add>, %115, %cst_57 [0] : vector<16x128xf32> to vector<128xf32>
    %120 = vector.shape_cast %119 : vector<128xf32> to vector<1x128xf32>
    %121 = arith.addf %93, %120 : vector<1x128xf32>
    %122 = arith.mulf %115, %115 : vector<16x128xf32>
    %cst_58 = arith.constant dense<0.000000e+00> : vector<128xf32>
    %123 = vector.multi_reduction <add>, %122, %cst_58 [0] : vector<16x128xf32> to vector<128xf32>
    %124 = vector.shape_cast %123 : vector<128xf32> to vector<1x128xf32>
    %125 = arith.addf %97, %124 : vector<1x128xf32>
    %cst_59 = arith.constant 0.000000e+00 : f32
    %126 = vector.broadcast %cst_59 : f32 to vector<6x128xf32>
    %127 = tpu.concatenate %121, %125, %126 in 0 : vector<1x128xf32>, vector<1x128xf32>, vector<6x128xf32> -> vector<8x128xf32>
    %c0_60 = arith.constant 0 : index
    %c0_61 = arith.constant 0 : index
    %c0_62 = arith.constant 0 : index
    %c0_63 = arith.constant 0 : index
    %128 = vector.load %arg6[%c0_60, %c0_61, %c0_62, %c0_63] : memref<1x1x8x128xf32, #tpu.memory_space<vmem>>, vector<1x1x8x128xf32>
    %129 = vector.shape_cast %128 : vector<1x1x8x128xf32> to vector<8x128xf32>
    %130 = vector.shape_cast %127 : vector<8x128xf32> to vector<1x1x8x128xf32>
    tpu.vector_store %arg6[%c0_60, %c0_61, %c0_62, %c0_63], %130 {strides = array<i32>} : memref<1x1x8x128xf32, #tpu.memory_space<vmem>>, vector<1x1x8x128xf32>,
    return
  }
  func.func @transform_0(%arg0: i32, %arg1: i32) -> (i32, i32, i32, i32) {
    %c0_i32 = arith.constant 0 : i32
    %c0_i32_0 = arith.constant 0 : i32
    %c0_i32_1 = arith.constant 0 : i32
    return %arg0, %arg1, %c0_i32, %c0_i32_0 : i32, i32, i32, i32
  }
  func.func @transform_1(%arg0: i32, %arg1: i32) -> (i32, i32) {
    %c0_i32 = arith.constant 0 : i32
    %c0_i32_0 = arith.constant 0 : i32
    %c0_i32_1 = arith.constant 0 : i32
    return %c0_i32, %c0_i32_0 : i32, i32
  }
  func.func @transform_2(%arg0: i32, %arg1: i32) -> (i32, i32) {
    %c0_i32 = arith.constant 0 : i32
    %c0_i32_0 = arith.constant 0 : i32
    %c0_i32_1 = arith.constant 0 : i32
    return %c0_i32, %c0_i32_0 : i32, i32
  }
  func.func @transform_3(%arg0: i32, %arg1: i32) -> (i32, i32, i32, i32, i32) {
    %c0_i32 = arith.constant 0 : i32
    %c0_i32_0 = arith.constant 0 : i32
    %c0_i32_1 = arith.constant 0 : i32
    %c0_i32_2 = arith.constant 0 : i32
    return %arg0, %c0_i32, %c0_i32_0, %arg1, %c0_i32_1 : i32, i32, i32, i32, i32
  }
  func.func @transform_4(%arg0: i32, %arg1: i32) -> (i32, i32, i32, i32) {
    %c0_i32 = arith.constant 0 : i32
    %c0_i32_0 = arith.constant 0 : i32
    %c0_i32_1 = arith.constant 0 : i32
    return %arg0, %arg1, %c0_i32, %c0_i32_0 : i32, i32, i32, i32
  }
}

</mosaic_0001>

<llo_original>
// kernel: tile.111
$region0: #{tile.111}
  #allocation0 [shape = 's32[1]{0}', space=sflag, size = 0x4, scoped, tag = 'scoped memory for tile.111']
  %s0 = inlined_call_operand.vmem [shape: f32[4], index: 0, kind: input, shape index: {}]
  %s1 = inlined_call_operand.vmem [shape: f32[16,4], index: 1, kind: output, shape index: {}]
  // Predicated region
  $region2: #{tile.111} parent=0 // pred_check
    _
  $region3: #{tile.111} parent=0 // pred_check_branch
    %3 = sbr.rel (0) target = $region5
  $region4: #{tile.111} parent=0 // pred_region
    _
  $region5: #{tile.111} parent=0 // pred_fallthru
    _
  %v4 = vld [vmem:[%s0] ss:$0 sm:$0xff]
  %5 = vst [vmem:[%s1] sm:$0xff] %v4
  %s6 = scalar_lea.vmem %s1, 8
  %7 = vst [vmem:[%s6] sm:$0xff] %v4

// kernel: tile.127
$region0: #{tile.127}
  %s0 = inlined_call_operand.vmem [shape: f32[16,4], index: 0, kind: input, shape index: {}]
  %s1 = inlined_call_operand.vmem [shape: f32[1,64], index: 1, kind: output, shape index: {}]
  $region1: #{tile.127} parent=0
    #allocation0 [shape = 'u8[4096]{0}', space=vmem, size = 0x1000, scoped, tag = 'scoped mem for output reshape']
    %v2 = vld [vmem:[%s0] sm:$0x1]
    %vm3 = vcmask 31744
    %4 = vst.msk [vmem:[#allocation0] sm:$0x1] %vm3, %v2
    %s5 = scalar_lea.vmem %s0, 15
    %v6 = vld [vmem:[%s5] sm:$0x1]
    %7 = vrot.lane.b32.xlu0 %v6, 60
    %v8 = vpop.permute.xlu0 %7
    %vm9 = vcmask 523744
    %10 = vst.msk [vmem:[#allocation0] sm:$0x1] %vm9, %v8
    %s11 = scalar_lea.vmem %s0, 14
    %v12 = vld [vmem:[%s11] sm:$0x1]
    %13 = vrot.lane.b32.xlu0 %v12, 56
    %v14 = vpop.permute.xlu0 %13
    %vm15 = vcmask 490944
    %16 = vst.msk [vmem:[#allocation0] sm:$0x1] %vm15, %v14
    %s17 = scalar_lea.vmem %s0, 13
    %v18 = vld [vmem:[%s17] sm:$0x1]
    %19 = vrot.lane.b32.xlu0 %v18, 52
    %v20 = vpop.permute.xlu0 %19
    %vm21 = vcmask 458144
    %22 = vst.msk [vmem:[#allocation0] sm:$0x1] %vm21, %v20
    %s23 = scalar_lea.vmem %s0, 12
    %v24 = vld [vmem:[%s23] sm:$0x1]
    %25 = vrot.lane.b32.xlu0 %v24, 48
    %v26 = vpop.permute.xlu0 %25
    %vm27 = vcmask 425344
    %28 = vst.msk [vmem:[#allocation0] sm:$0x1] %vm27, %v26
    %s29 = scalar_lea.vmem %s0, 11
    %v30 = vld [vmem:[%s29] sm:$0x1]
    %31 = vrot.lane.b32.xlu0 %v30, 44
    %v32 = vpop.permute.xlu0 %31
    %vm33 = vcmask 392544
    %34 = vst.msk [vmem:[#allocation0] sm:$0x1] %vm33, %v32
    %s35 = scalar_lea.vmem %s0, 10
    %v36 = vld [vmem:[%s35] sm:$0x1]
    %37 = vrot.lane.b32.xlu0 %v36, 40
    %v38 = vpop.permute.xlu0 %37
    %vm39 = vcmask 359744
    %40 = vst.msk [vmem:[#allocation0] sm:$0x1] %vm39, %v38
    %s41 = scalar_lea.vmem %s0, 9
    %v42 = vld [vmem:[%s41] sm:$0x1]
    %43 = vrot.lane.b32.xlu0 %v42, 36
    %v44 = vpop.permute.xlu0 %43
    %vm45 = vcmask 326944
    %46 = vst.msk [vmem:[#allocation0] sm:$0x1] %vm45, %v44
    %s47 = scalar_lea.vmem %s0, 8
    %v48 = vld [vmem:[%s47] sm:$0x1]
    %49 = vrot.lane.b32.xlu0 %v48, 32
    %v50 = vpop.permute.xlu0 %49
    %vm51 = vcmask 294144
    %52 = vst.msk [vmem:[#allocation0] sm:$0x1] %vm51, %v50
    %s53 = scalar_lea.vmem %s0, 7
    %v54 = vld [vmem:[%s53] sm:$0x1]
    %55 = vrot.lane.b32.xlu0 %v54, 28
    %v56 = vpop.permute.xlu0 %55
    %vm57 = vcmask 261344
    %58 = vst.msk [vmem:[#allocation0] sm:$0x1] %vm57, %v56
    %s59 = scalar_lea.vmem %s0, 6
    %v60 = vld [vmem:[%s59] sm:$0x1]
    %61 = vrot.lane.b32.xlu0 %v60, 24
    %v62 = vpop.permute.xlu0 %61
    %vm63 = vcmask 228544
    %64 = vst.msk [vmem:[#allocation0] sm:$0x1] %vm63, %v62
    %s65 = scalar_lea.vmem %s0, 5
    %v66 = vld [vmem:[%s65] sm:$0x1]
    %67 = vrot.lane.b32.xlu0 %v66, 20
    %v68 = vpop.permute.xlu0 %67
    %vm69 = vcmask 195744
    %70 = vst.msk [vmem:[#allocation0] sm:$0x1] %vm69, %v68
    %s71 = scalar_lea.vmem %s0, 4
    %v72 = vld [vmem:[%s71] sm:$0x1]
    %73 = vrot.lane.b32.xlu0 %v72, 16
    %v74 = vpop.permute.xlu0 %73
    %vm75 = vcmask 162944
    %76 = vst.msk [vmem:[#allocation0] sm:$0x1] %vm75, %v74
    %s77 = scalar_lea.vmem %s0, 3
    %v78 = vld [vmem:[%s77] sm:$0x1]
    %79 = vrot.lane.b32.xlu0 %v78, 12
    %v80 = vpop.permute.xlu0 %79
    %vm81 = vcmask 130144
    %82 = vst.msk [vmem:[#allocation0] sm:$0x1] %vm81, %v80
    %s83 = scalar_lea.vmem %s0, 2
    %v84 = vld [vmem:[%s83] sm:$0x1]
    %85 = vrot.lane.b32.xlu0 %v84, 8
    %v86 = vpop.permute.xlu0 %85
    %vm87 = vcmask 97344
    %88 = vst.msk [vmem:[#allocation0] sm:$0x1] %vm87, %v86
    %s89 = scalar_lea.vmem %s0, 1
    %v90 = vld [vmem:[%s89] sm:$0x1]
    %91 = vrot.lane.b32.xlu0 %v90, 4
    %v92 = vpop.permute.xlu0 %91
    %vm93 = vcmask 64544
    %94 = vst.msk [vmem:[#allocation0] sm:$0x1] %vm93, %v92
    %s96 = sshllo.u32 0, 1
    %v98 = vld [vmem:[#allocation0] sm:%s96]
    %s99 = sshllo.u32 0, 1
    %100 = vst [vmem:[%s1] sm:%s99] %v98

// kernel: ds_basic_deconv_forward.1
$region0: #{ds_basic_deconv_forward.1}
  #allocation0 [shape = 'u32[]', space=smem, size = 0x4, offset = 0x4, fixed_abs, tag = 'smem constant byte address 0x4 - core index']
  #allocation1 [shape = 'u32[144,128]{1,0:T(1,128)}', space=vmem, size = 0x12000, scoped, tag = 'internal scratch']
  %s0 = inlined_call_operand.vmem [shape: f32[2,1,18,72], index: 0, kind: input, shape index: {}]
  %s1 = inlined_call_operand.vmem [shape: f32[16,64], index: 1, kind: input, shape index: {}]
  %s2 = inlined_call_operand.vmem [shape: f32[64,128], index: 2, kind: input, shape index: {}]
  %s3 = inlined_call_operand.vmem [shape: f32[2,2,2,16,128], index: 3, kind: output, shape index: {0}]
  %s4 = inlined_call_operand.vmem [shape: f32[2,1,8,128], index: 4, kind: output, shape index: {1}]
  %5 = xla_tuple %s3, %s4
  %s6 = sld [smem:[#allocation0]]
  $region53: #{ds_basic_deconv_forward.1} parent=0
    _
  %s8 = ssub.s32 1, %s6
  %s9 = scalar_select 0, %s8, %s6
  loop: start=0, step=1, limit=4
  $region2: #{ds_basic_deconv_forward.1} parent=0 // loop_pre_header
    _
  $region3: #{ds_basic_deconv_forward.1} parent=0 // loop_header
    %s11 = sphi 0, %s15
    %p12 = scmp.ge.s32.totalorder %s11, 4
    %s18 = sphi 0, %s30
    %s19 = sphi 0, %s26
    %s20 = sphi 0, %s18
    %s21 = sphi 0, %s19
    %s22 = sphi 0, %s20
    %s23 = sphi 0, %s21
    %s35 = sphi 0, %s37
    %s38 = sphi 0, %s35
    %s39 = sphi 0, %s38
    %s55 = sphi 0, %s39
    %s59 = sphi 0, %s59
    %s61 = sphi 0, %s59
    %s62 = sphi 0, %s61
    %s76 = sphi 0, %s62
    %s80 = sphi 0, %s80
    %s82 = sphi 0, %s80
    %s83 = sphi 0, %s82
    %s97 = sphi 0, %s83
    %s105 = sphi 0, %s107
    %s108 = sphi 0, %s105
    %s109 = sphi 0, %s108
    %s125 = sphi 0, %s109
    %s133 = sphi 0, %s135
    %s136 = sphi 0, %s133
    %s137 = sphi 0, %s136
    %s153 = sphi 0, %s137
  $region4: #{ds_basic_deconv_forward.1} parent=0 // loop_header_branch
    %14 = sbr.rel (%p12) target = $region8
  $region5: #{ds_basic_deconv_forward.1} parent=0 // loop_body
    %s16 = ssub.s32 %s11, 1
    %s17 = ssub.s32 %s11, 2
    %s24 = sadd.s32 1, %s19
    %p25 = scmp.ge.s32.totalorder %s24, 1
    %s26 = scalar_select %p25, 0, %s24
    %s27 = sadd.s32 1, %s18
    %s28 = scalar_select %p25, %s27, %s18
    %p29 = scmp.ge.s32.totalorder %s28, 2
    %s30 = scalar_select %p29, 0, %s28
    %s31 = ssub.s32 %s18, %s30
    %s32 = ssub.s32 %s19, %s26
    %s33 = sor.u32 %s31, %s32
    %p34 = scmp.eq.s32.totalorder %s33, 0
    %s36 = sadd.s32 %s35, 1
    %s37 = scalar_select %p34, %s35, %s36
    %p40 = pneg %p34
    %p41 = scmp.eq.s32.totalorder %s11, 1
    %p42 = por %p40, %p41
    %p43 = scmp.ne.s32.totalorder %s35, %s38
    %p44 = scmp.eq.s32.totalorder %s11, 0
    %p45 = por %p43, %p44
    %p46 = scmp.ne.s32.totalorder %s35, %s38
    %p47 = scmp.eq.s32.totalorder %s16, 1
    %p48 = por %p46, %p47
    %p49 = scmp.ne.s32.totalorder %s38, %s39
    %p50 = scmp.eq.s32.totalorder %s16, 0
    %p51 = por %p49, %p50
    %p52 = scmp.ne.s32.totalorder %s38, %s39
    %p53 = scmp.eq.s32.totalorder %s17, 1
    %p54 = por %p52, %p53
    %p56 = scmp.ne.s32.totalorder %s39, %s55
    %p57 = scmp.eq.s32.totalorder %s17, 0
    %p58 = por %p56, %p57
    %s60 = sadd.s32 %s59, 1
    %p63 = scmp.eq.s32.totalorder %s11, 1
    %p64 = scmp.ne.s32.totalorder %s59, %s61
    %p65 = scmp.eq.s32.totalorder %s11, 0
    %p66 = por %p64, %p65
    %p67 = scmp.ne.s32.totalorder %s59, %s61
    %p68 = scmp.eq.s32.totalorder %s16, 1
    %p69 = por %p67, %p68
    %p70 = scmp.ne.s32.totalorder %s61, %s62
    %p71 = scmp.eq.s32.totalorder %s16, 0
    %p72 = por %p70, %p71
    %p73 = scmp.ne.s32.totalorder %s61, %s62
    %p74 = scmp.eq.s32.totalorder %s17, 1
    %p75 = por %p73, %p74
    %p77 = scmp.ne.s32.totalorder %s62, %s76
    %p78 = scmp.eq.s32.totalorder %s17, 0
    %p79 = por %p77, %p78
    %s81 = sadd.s32 %s80, 1
    %p84 = scmp.eq.s32.totalorder %s11, 1
    %p85 = scmp.ne.s32.totalorder %s80, %s82
    %p86 = scmp.eq.s32.totalorder %s11, 0
    %p87 = por %p85, %p86
    %p88 = scmp.ne.s32.totalorder %s80, %s82
    %p89 = scmp.eq.s32.totalorder %s16, 1
    %p90 = por %p88, %p89
    %p91 = scmp.ne.s32.totalorder %s82, %s83
    %p92 = scmp.eq.s32.totalorder %s16, 0
    %p93 = por %p91, %p92
    %p94 = scmp.ne.s32.totalorder %s82, %s83
    %p95 = scmp.eq.s32.totalorder %s17, 1
    %p96 = por %p94, %p95
    %p98 = scmp.ne.s32.totalorder %s83, %s97
    %p99 = scmp.eq.s32.totalorder %s17, 0
    %p100 = por %p98, %p99
    %s101 = ssub.s32 %s18, %s30
    %s102 = ssub.s32 %s19, %s26
    %s103 = sor.u32 %s101, %s102
    %p104 = scmp.eq.s32.totalorder %s103, 0
    %s106 = sadd.s32 %s105, 1
    %s107 = scalar_select %p104, %s105, %s106
    %p110 = pneg %p104
    %p111 = scmp.eq.s32.totalorder %s11, 1
    %p112 = por %p110, %p111
    %p113 = scmp.ne.s32.totalorder %s105, %s108
    %p114 = scmp.eq.s32.totalorder %s11, 0
    %p115 = por %p113, %p114
    %p116 = scmp.ne.s32.totalorder %s105, %s108
    %p117 = scmp.eq.s32.totalorder %s16, 1
    %p118 = por %p116, %p117
    %p119 = scmp.ne.s32.totalorder %s108, %s109
    %p120 = scmp.eq.s32.totalorder %s16, 0
    %p121 = por %p119, %p120
    %p122 = scmp.ne.s32.totalorder %s108, %s109
    %p123 = scmp.eq.s32.totalorder %s17, 1
    %p124 = por %p122, %p123
    %p126 = scmp.ne.s32.totalorder %s109, %s125
    %p127 = scmp.eq.s32.totalorder %s17, 0
    %p128 = por %p126, %p127
    %s129 = ssub.s32 %s18, %s30
    %s130 = ssub.s32 %s19, %s26
    %s131 = sor.u32 %s129, %s130
    %p132 = scmp.eq.s32.totalorder %s131, 0
    %s134 = sadd.s32 %s133, 1
    %s135 = scalar_select %p132, %s133, %s134
    %p138 = pneg %p132
    %p139 = scmp.eq.s32.totalorder %s11, 1
    %p140 = por %p138, %p139
    %p141 = scmp.ne.s32.totalorder %s133, %s136
    %p142 = scmp.eq.s32.totalorder %s11, 0
    %p143 = por %p141, %p142
    %p144 = scmp.ne.s32.totalorder %s133, %s136
    %p145 = scmp.eq.s32.totalorder %s16, 1
    %p146 = por %p144, %p145
    %p147 = scmp.ne.s32.totalorder %s136, %s137
    %p148 = scmp.eq.s32.totalorder %s16, 0
    %p149 = por %p147, %p148
    %p150 = scmp.ne.s32.totalorder %s136, %s137
    %p151 = scmp.eq.s32.totalorder %s17, 1
    %p152 = por %p150, %p151
    %p154 = scmp.ne.s32.totalorder %s137, %s153
    %p155 = scmp.eq.s32.totalorder %s17, 0
    %p156 = por %p154, %p155
    %p157 = scmp.le.s32.totalorder 1, %s11
    %p158 = scmp.lt.s32.totalorder %s11, 3
    %p159 = pnand %p157, %p158
    %p160 = pneg %p159
    // Predicated region
    $region9: #{ds_basic_deconv_forward.1} parent=5 // pred_check
      _
    $region10: #{ds_basic_deconv_forward.1} parent=5 // pred_check_branch
      %162 = sbr.rel (%p159) target = $region12
    $region11: #{ds_basic_deconv_forward.1} parent=5 // pred_region
      %s163 = ssub.s32 %s11, 1
      // Predicated region
      $region13: #{ds_basic_deconv_forward.1} parent=11 // pred_check
        %p164 = pneg %p72
      $region14: #{ds_basic_deconv_forward.1} parent=11 // pred_check_branch
        %166 = sbr.rel (%p164) target = $region16
      $region15: #{ds_basic_deconv_forward.1} parent=11 // pred_region
        _
      $region16: #{ds_basic_deconv_forward.1} parent=11 // pred_fallthru
        _
      // Predicated region
      $region17: #{ds_basic_deconv_forward.1} parent=11 // pred_check
        %p167 = pneg %p93
      $region18: #{ds_basic_deconv_forward.1} parent=11 // pred_check_branch
        %169 = sbr.rel (%p167) target = $region20
      $region19: #{ds_basic_deconv_forward.1} parent=11 // pred_region
        _
      $region20: #{ds_basic_deconv_forward.1} parent=11 // pred_fallthru
        _
    $region12: #{ds_basic_deconv_forward.1} parent=5 // pred_fallthru
      _
    %p170 = scmp.lt.s32.totalorder %s11, 2
    // Predicated region
    $region21: #{ds_basic_deconv_forward.1} parent=5 // pred_check
      %p171 = pneg %p170
    $region22: #{ds_basic_deconv_forward.1} parent=5 // pred_check_branch
      %173 = sbr.rel (%p171) target = $region24
    $region23: #{ds_basic_deconv_forward.1} parent=5 // pred_region
      // Predicated region
      $region25: #{ds_basic_deconv_forward.1} parent=23 // pred_check
        %p174 = pneg %p45
      $region26: #{ds_basic_deconv_forward.1} parent=23 // pred_check_branch
        %176 = sbr.rel (%p174) target = $region28
      $region27: #{ds_basic_deconv_forward.1} parent=23 // pred_region
        %p177 = scmp.lt.s32.totalorder %s18, 1
        %s178 = scalar_select %p177, %s18, 1
        %p179 = scmp.lt.s32.totalorder %s19, 0
        %s180 = scalar_select %p179, %s19, 0
        %s181 = smul.addr %s180, 3
        %s182 = smul.addr %s178, 3
        %s183 = sadd.s32 %s181, %s182
        %s184 = smul.addr %s183, 8
        %s185 = scalar_lea.vmem %s0, %s184
      $region28: #{ds_basic_deconv_forward.1} parent=23 // pred_fallthru
        _
    $region24: #{ds_basic_deconv_forward.1} parent=5 // pred_fallthru
      _
    %p186 = scmp.le.s32.totalorder 1, %s11
    %p187 = scmp.lt.s32.totalorder %s11, 3
    %p188 = pnand %p186, %p187
    %p189 = pneg %p188
    // Predicated region
    $region29: #{ds_basic_deconv_forward.1} parent=5 // pred_check
      _
    $region30: #{ds_basic_deconv_forward.1} parent=5 // pred_check_branch
      %191 = sbr.rel (%p188) target = $region32
    $region31: #{ds_basic_deconv_forward.1} parent=5 // pred_region
      %s192 = ssub.s32 %s11, 1
      %p193 = scmp.lt.s32.totalorder %s20, 1
      %s194 = scalar_select %p193, %s20, 1
      %p195 = scmp.lt.s32.totalorder %s21, 0
      %s196 = scalar_select %p195, %s21, 0
      %s197 = smul.addr %s196, 3
      %s198 = smul.addr %s194, 3
      %s199 = sadd.s32 %s197, %s198
      %s200 = smul.addr %s199, 8
      %s201 = scalar_lea.vmem %s0, %s200
      %p202 = pneg %p51
      %p203 = pneg %p48
      %p204 = pneg %p72
      %p205 = pneg %p69
      %p206 = pneg %p93
      %p207 = pneg %p90
      %p208 = pneg %p121
      %p209 = pneg %p118
      %s210 = smul.u32 2, %s21
      %p211 = scmp.lt.s32.totalorder %s20, 1
      %s212 = scalar_select %p211, %s20, 1
      %p213 = scmp.lt.s32.totalorder %s210, 1
      %s214 = scalar_select %p213, %s210, 1
      %s215 = smul.addr %s212, 8
      %s216 = sadd.s32 %s214, %s215
      %s217 = smul.addr %s216, 8
      %s218 = scalar_lea.vmem %s3, %s217
      %p219 = pneg %p149
      %p220 = pneg %p146
      %p221 = scmp.lt.s32.totalorder %s20, 1
      %s222 = scalar_select %p221, %s20, 1
      %p223 = scmp.lt.s32.totalorder %s21, 0
      %s224 = scalar_select %p223, %s21, 0
      %s225 = sadd.s32 %s224, %s222
      %s226 = smul.addr %s225, 8
      %s227 = scalar_lea.vmem %s4, %s226
      %p228 = scmp.lt.s32.totalorder %s20, 1
      %s229 = scalar_select %p228, %s20, 1
      %p230 = scmp.lt.s32.totalorder %s21, 0
      %s231 = scalar_select %p230, %s21, 0
      %s232 = smul.addr %s231, 3
      %s233 = smul.addr %s229, 3
      %s234 = sadd.s32 %s232, %s233
      %s235 = smul.addr %s234, 8
      %s236 = scalar_lea.vmem %s0, %s235
      %s237 = smul.u32 2, %s21
      %p238 = scmp.lt.s32.totalorder %s20, 1
      %s239 = scalar_select %p238, %s20, 1
      %p240 = scmp.lt.s32.totalorder %s237, 1
      %s241 = scalar_select %p240, %s237, 1
      %s242 = smul.addr %s239, 8
      %s243 = sadd.s32 %s241, %s242
      %s244 = smul.addr %s243, 8
      %s245 = scalar_lea.vmem %s3, %s244
      %s246 = smul.u32 2, %s21
      %p247 = scmp.lt.s32.totalorder %s20, 1
      %s248 = scalar_select %p247, %s20, 1
      %p249 = scmp.lt.s32.totalorder %s21, 0
      %s250 = scalar_select %p249, %s21, 0
      %s251 = sadd.s32 %s250, %s248
      %s252 = smul.addr %s251, 8
      %s253 = scalar_lea.vmem %s4, %s252
      %v254 = vld [vmem:[%s236] sm:$0xff]
      %v255 = vld [vmem:[%s236 + $0x8] sm:$0xff]
      %v256 = vld [vmem:[%s236 + $0x10] sm:$0x3]
      %v257 = vld [vmem:[%s2] sm:$0xff]
      %v258 = vld [vmem:[%s2 + $0x8] sm:$0xff]
      %v259 = vld [vmem:[%s2 + $0x10] sm:$0xff]
      %v260 = vld [vmem:[%s2 + $0x18] sm:$0xff]
      %v261 = vld [vmem:[%s2 + $0x20] sm:$0xff]
      %v262 = vld [vmem:[%s2 + $0x28] sm:$0xff]
      %v263 = vld [vmem:[%s2 + $0x30] sm:$0xff]
      %v264 = vld [vmem:[%s2 + $0x38] sm:$0xff]
      %v265 = vld [vmem:[%s1] sm:$0x1]
      %v266 = vlaneseq
      %v267 = vshrl.u32 %v266, 7
      %v268 = vsub.s32 0, %v267
      %v269 = vrot.slane %v265, %v268
      %v270 = vmul.f32 %v254, %v269
      %v271 = vmul.f32 %v255, %v269
      %v272 = vadd.f32 %v270, 0.0
      %v273 = vadd.f32 %v271, 0.0
      %v274 = vld [vmem:[%s1 + $0x1] sm:$0x1]
      %v275 = vlaneseq
      %v276 = vshrl.u32 %v275, 7
      %v277 = vsub.s32 0, %v276
      %v278 = vrot.slane %v274, %v277
      %280 = vrot.lane.b32.xlu0 %v278, 4
      %v281 = vpop.permute.xlu0 %280
      %v283 = vmul.f32 %v254, %v281
      %v284 = vmul.f32 %v255, %v281
      %287 = vrot.lane.b32.xlu0 %v283, 124
      %v288 = vpop.permute.xlu0 %287
      %289 = vrot.lane.b32.xlu0 %v284, 124
      %v290 = vpop.permute.xlu0 %289
      %v293 = vadd.f32 %v272, %v288
      %v294 = vadd.f32 %v273, %v290
      %v295 = vld [vmem:[%s1 + $0x2] sm:$0x1]
      %v296 = vlaneseq
      %v297 = vshrl.u32 %v296, 7
      %v298 = vsub.s32 0, %v297
      %v299 = vrot.slane %v295, %v298
      %v300 = vmul.f32 %v254, %v299
      %v301 = vmul.f32 %v255, %v299
      %v302 = vmul.f32 %v256, %v299
      %vm306 = vcmask 1046528
      %v307 = vrot.slane %v300, 1
      %v308 = vrot.slane %v301, 1
      %v309 = vsel %vm306, %v307, %v308
      %v310 = vrot.slane %v302, 1
      %v311 = vsel %vm306, %v308, %v310
      %v314 = vadd.f32 %v293, %v309
      %v315 = vadd.f32 %v294, %v311
      %v316 = vld [vmem:[%s1 + $0x3] sm:$0x1]
      %v317 = vlaneseq
      %v318 = vshrl.u32 %v317, 7
      %v319 = vsub.s32 0, %v318
      %v320 = vrot.slane %v316, %v319
      %322 = vrot.lane.b32.xlu0 %v320, 4
      %v323 = vpop.permute.xlu0 %322
      %v325 = vmul.f32 %v254, %v323
      %v326 = vmul.f32 %v255, %v323
      %v327 = vmul.f32 %v256, %v323
      %v331 = vrot.slane %v325, 1
      %v332 = vrot.slane %v326, 1
      %v333 = vsel %vm306, %v331, %v332
      %v334 = vrot.slane %v327, 1
      %v335 = vsel %vm306, %v332, %v334
      %336 = vrot.lane.b32.xlu0 %v333, 124
      %v337 = vpop.permute.xlu0 %336
      %338 = vrot.lane.b32.xlu0 %v335, 124
      %v339 = vpop.permute.xlu0 %338
      %v342 = vadd.f32 %v314, %v337
      %v343 = vadd.f32 %v315, %v339
      %vm344 = vcmask 523264
      %v346 = vsel %vm344, %v342, 0
      %v349 = vsel %vm344, %v343, 0
      %351 = vmatprep.subr.mxu0 0.0
      %352 = vmatpush1.msra.mxu0 %v257
      %353 = vmatprep.subr.mxu0 0.0
      %354 = vmatpush1.msra.mxu0 %v258
      %355 = vmatprep.subr.mxu0 0.0
      %356 = vmatpush1.msra.mxu0 %v259
      %357 = vmatprep.subr.mxu0 0.0
      %358 = vmatpush1.msra.mxu0 %v260
      %359 = vmatprep.subr.mxu0 0.0
      %360 = vmatpush1.msra.mxu0 %v261
      %361 = vmatprep.subr.mxu0 0.0
      %362 = vmatpush1.msra.mxu0 %v262
      %363 = vmatprep.subr.mxu0 0.0
      %364 = vmatpush1.msra.mxu0 %v263
      %365 = vmatprep.subr.mxu0 0.0
      %366 = vmatpush1.msra.mxu0 %v264
      %367 = vmatprep.subr.mxu0 0.0
      %368 = vmatpush1.msra.mxu0 0.0
      %369 = vmatprep.subr.mxu0 0.0
      %370 = vmatpush1.msra.mxu0 0.0
      %371 = vmatprep.subr.mxu0 0.0
      %372 = vmatpush1.msra.mxu0 0.0
      %373 = vmatprep.subr.mxu0 0.0
      %374 = vmatpush1.msra.mxu0 0.0
      %375 = vmatprep.subr.mxu0 0.0
      %376 = vmatpush1.msra.mxu0 0.0
      %377 = vmatprep.subr.mxu0 0.0
      %378 = vmatpush1.msra.mxu0 0.0
      %379 = vmatprep.subr.mxu0 0.0
      %380 = vmatpush1.msra.mxu0 0.0
      %381 = vmatprep.subr.mxu0 0.0
      %382 = vmatpush1.msra.mxu0 0.0
      %383 = vmatprep.subr.mxu0 0.0
      %384 = vmatpush1.msra.mxu0 0.0
      %385 = vmatprep.subr.mxu0 0.0
      %386 = vmatpush1.msra.mxu0 0.0
      %387 = vmatprep.subr.mxu0 0.0
      %388 = vmatpush1.msra.mxu0 0.0
      %389 = vmatprep.subr.mxu0 0.0
      %390 = vmatpush1.msra.mxu0 0.0
      %391 = vmatprep.subr.mxu0 0.0
      %392 = vmatpush1.msra.mxu0 0.0
      %393 = vmatprep.subr.mxu0 0.0
      %394 = vmatpush1.msra.mxu0 0.0
      %395 = vmatprep.subr.mxu0 0.0
      %396 = vmatpush1.msra.mxu0 0.0
      %397 = vmatprep.subr.mxu0 0.0
      %398 = vmatpush1.msra.mxu0 0.0
      %399 = vmatprep.subr.mxu0 0.0
      %400 = vmatpush1.msra.mxu0 0.0
      %401 = vmatprep.subr.mxu0 0.0
      %402 = vmatpush1.msra.mxu0 0.0
      %403 = vmatprep.subr.mxu0 0.0
      %404 = vmatpush1.msra.mxu0 0.0
      %405 = vmatprep.subr.mxu0 0.0
      %406 = vmatpush1.msra.mxu0 0.0
      %407 = vmatprep.subr.mxu0 0.0
      %408 = vmatpush1.msra.mxu0 0.0
      %409 = vmatprep.subr.mxu0 0.0
      %410 = vmatpush1.msra.mxu0 0.0
      %411 = vmatprep.subr.mxu0 0.0
      %412 = vmatpush1.msra.mxu0 0.0
      %413 = vmatprep.subr.mxu0 0.0
      %414 = vmatpush1.msra.mxu0 0.0
      %415 = vmatprep.mubr.f32.mxu0 0.0
      %416 = vmatmul.mubr.f32.gmra.mrb[0].mxu0 %v346
      %v417 = vpop.f32.mrb[0].mxu0
      %v418 = vadd.f32 0.0, %v417
      %v419 = vpop.f32.mrb[0].mxu0
      %420 = vmatprep.mubr.f32.mxu0 0.0
      %421 = vmatmul.mubr.f32.gmra.mrb[0].mxu0 %v349
      %v422 = vpop.f32.mrb[0].mxu0
      %v423 = vadd.f32 0.0, %v422
      %v424 = vpop.f32.mrb[0].mxu0
      %425 = vdwg.mxu0
      %426 = vst [vmem:[%s245] sm:$0xff] %v418
      %427 = vst [vmem:[%s245 + $0x8] sm:$0xff] %v423
      %v428 = vadd.f32 %v418, %v423
      %v429 = vrot.slane %v428, 4
      %v430 = vadd.f32 %v428, %v429
      %v431 = vrot.slane %v430, 2
      %v432 = vadd.f32 %v430, %v431
      %v433 = vrot.slane %v432, 1
      %v434 = vadd.f32 %v432, %v433
      %v435 = vadd.f32 %v434, 0.0
      %v436 = vmul.f32 %v418, %v418
      %v437 = vmul.f32 %v423, %v423
      %v438 = vadd.f32 %v436, %v437
      %v439 = vrot.slane %v438, 4
      %v440 = vadd.f32 %v438, %v439
      %v441 = vrot.slane %v440, 2
      %v442 = vadd.f32 %v440, %v441
      %v443 = vrot.slane %v442, 1
      %v444 = vadd.f32 %v442, %v443
      %v445 = vadd.f32 %v444, 0.0
      %v446 = vld [vmem:[%s1 + $0x4] sm:$0x1]
      %v447 = vlaneseq
      %v448 = vshrl.u32 %v447, 7
      %v449 = vsub.s32 0, %v448
      %v450 = vrot.slane %v446, %v449
      %452 = vrot.lane.b32.xlu0 %v450, 4
      %v453 = vpop.permute.xlu0 %452
      %v455 = vmul.f32 %v254, %v453
      %v456 = vmul.f32 %v255, %v453
      %v457 = vadd.f32 %v455, 0.0
      %v458 = vadd.f32 %v456, 0.0
      %v459 = vld [vmem:[%s1 + $0x5] sm:$0x1]
      %v460 = vlaneseq
      %v461 = vshrl.u32 %v460, 7
      %v462 = vsub.s32 0, %v461
      %v463 = vrot.slane %v459, %v462
      %465 = vrot.lane.b32.xlu0 %v463, 8
      %v466 = vpop.permute.xlu0 %465
      %v468 = vmul.f32 %v254, %v466
      %v469 = vmul.f32 %v255, %v466
      %472 = vrot.lane.b32.xlu0 %v468, 124
      %v473 = vpop.permute.xlu0 %472
      %474 = vrot.lane.b32.xlu0 %v469, 124
      %v475 = vpop.permute.xlu0 %474
      %v478 = vadd.f32 %v457, %v473
      %v479 = vadd.f32 %v458, %v475
      %v480 = vld [vmem:[%s1 + $0x6] sm:$0x1]
      %v481 = vlaneseq
      %v482 = vshrl.u32 %v481, 7
      %v483 = vsub.s32 0, %v482
      %v484 = vrot.slane %v480, %v483
      %486 = vrot.lane.b32.xlu0 %v484, 4
      %v487 = vpop.permute.xlu0 %486
      %v489 = vmul.f32 %v254, %v487
      %v490 = vmul.f32 %v255, %v487
      %v491 = vmul.f32 %v256, %v487
      %v495 = vrot.slane %v489, 1
      %v496 = vrot.slane %v490, 1
      %v497 = vsel %vm306, %v495, %v496
      %v498 = vrot.slane %v491, 1
      %v499 = vsel %vm306, %v496, %v498
      %v502 = vadd.f32 %v478, %v497
      %v503 = vadd.f32 %v479, %v499
      %v504 = vld [vmem:[%s1 + $0x7] sm:$0x1]
      %v505 = vlaneseq
      %v506 = vshrl.u32 %v505, 7
      %v507 = vsub.s32 0, %v506
      %v508 = vrot.slane %v504, %v507
      %510 = vrot.lane.b32.xlu0 %v508, 8
      %v511 = vpop.permute.xlu0 %510
      %v513 = vmul.f32 %v254, %v511
      %v514 = vmul.f32 %v255, %v511
      %v515 = vmul.f32 %v256, %v511
      %v519 = vrot.slane %v513, 1
      %v520 = vrot.slane %v514, 1
      %v521 = vsel %vm306, %v519, %v520
      %v522 = vrot.slane %v515, 1
      %v523 = vsel %vm306, %v520, %v522
      %524 = vrot.lane.b32.xlu0 %v521, 124
      %v525 = vpop.permute.xlu0 %524
      %526 = vrot.lane.b32.xlu0 %v523, 124
      %v527 = vpop.permute.xlu0 %526
      %v530 = vadd.f32 %v502, %v525
      %v531 = vadd.f32 %v503, %v527
      %534 = vrot.lane.b32.xlu0 %v530, 124
      %v535 = vpop.permute.xlu0 %534
      %536 = vrot.lane.b32.xlu0 %v531, 124
      %v537 = vpop.permute.xlu0 %536
      %v538 = vsel %vm344, %v535, 0
      %v540 = vsel %vm344, %v537, 0
      %542 = vmatprep.subr.mxu0 0.0
      %543 = vmatpush1.msra.mxu0 %v257
      %544 = vmatprep.subr.mxu0 0.0
      %545 = vmatpush1.msra.mxu0 %v258
      %546 = vmatprep.subr.mxu0 0.0
      %547 = vmatpush1.msra.mxu0 %v259
      %548 = vmatprep.subr.mxu0 0.0
      %549 = vmatpush1.msra.mxu0 %v260
      %550 = vmatprep.subr.mxu0 0.0
      %551 = vmatpush1.msra.mxu0 %v261
      %552 = vmatprep.subr.mxu0 0.0
      %553 = vmatpush1.msra.mxu0 %v262
      %554 = vmatprep.subr.mxu0 0.0
      %555 = vmatpush1.msra.mxu0 %v263
      %556 = vmatprep.subr.mxu0 0.0
      %557 = vmatpush1.msra.mxu0 %v264
      %558 = vmatprep.subr.mxu0 0.0
      %559 = vmatpush1.msra.mxu0 0.0
      %560 = vmatprep.subr.mxu0 0.0
      %561 = vmatpush1.msra.mxu0 0.0
      %562 = vmatprep.subr.mxu0 0.0
      %563 = vmatpush1.msra.mxu0 0.0
      %564 = vmatprep.subr.mxu0 0.0
      %565 = vmatpush1.msra.mxu0 0.0
      %566 = vmatprep.subr.mxu0 0.0
      %567 = vmatpush1.msra.mxu0 0.0
      %568 = vmatprep.subr.mxu0 0.0
      %569 = vmatpush1.msra.mxu0 0.0
      %570 = vmatprep.subr.mxu0 0.0
      %571 = vmatpush1.msra.mxu0 0.0
      %572 = vmatprep.subr.mxu0 0.0
      %573 = vmatpush1.msra.mxu0 0.0
      %574 = vmatprep.subr.mxu0 0.0
      %575 = vmatpush1.msra.mxu0 0.0
      %576 = vmatprep.subr.mxu0 0.0
      %577 = vmatpush1.msra.mxu0 0.0
      %578 = vmatprep.subr.mxu0 0.0
      %579 = vmatpush1.msra.mxu0 0.0
      %580 = vmatprep.subr.mxu0 0.0
      %581 = vmatpush1.msra.mxu0 0.0
      %582 = vmatprep.subr.mxu0 0.0
      %583 = vmatpush1.msra.mxu0 0.0
      %584 = vmatprep.subr.mxu0 0.0
      %585 = vmatpush1.msra.mxu0 0.0
      %586 = vmatprep.subr.mxu0 0.0
      %587 = vmatpush1.msra.mxu0 0.0
      %588 = vmatprep.subr.mxu0 0.0
      %589 = vmatpush1.msra.mxu0 0.0
      %590 = vmatprep.subr.mxu0 0.0
      %591 = vmatpush1.msra.mxu0 0.0
      %592 = vmatprep.subr.mxu0 0.0
      %593 = vmatpush1.msra.mxu0 0.0
      %594 = vmatprep.subr.mxu0 0.0
      %595 = vmatpush1.msra.mxu0 0.0
      %596 = vmatprep.subr.mxu0 0.0
      %597 = vmatpush1.msra.mxu0 0.0
      %598 = vmatprep.subr.mxu0 0.0
      %599 = vmatpush1.msra.mxu0 0.0
      %600 = vmatprep.subr.mxu0 0.0
      %601 = vmatpush1.msra.mxu0 0.0
      %602 = vmatprep.subr.mxu0 0.0
      %603 = vmatpush1.msra.mxu0 0.0
      %604 = vmatprep.subr.mxu0 0.0
      %605 = vmatpush1.msra.mxu0 0.0
      %606 = vmatprep.mubr.f32.mxu0 0.0
      %607 = vmatmul.mubr.f32.gmra.mrb[0].mxu0 %v538
      %v608 = vpop.f32.mrb[0].mxu0
      %v609 = vadd.f32 0.0, %v608
      %v610 = vpop.f32.mrb[0].mxu0
      %611 = vmatprep.mubr.f32.mxu0 0.0
      %612 = vmatmul.mubr.f32.gmra.mrb[0].mxu0 %v540
      %v613 = vpop.f32.mrb[0].mxu0
      %v614 = vadd.f32 0.0, %v613
      %v615 = vpop.f32.mrb[0].mxu0
      %616 = vdwg.mxu0
      %s617 = scalar_lea.vmem %s245, 16
      %618 = vst [vmem:[%s617] sm:$0xff] %v609
      %619 = vst [vmem:[%s617 + $0x8] sm:$0xff] %v614
      %v620 = vadd.f32 %v609, %v614
      %v621 = vrot.slane %v620, 4
      %v622 = vadd.f32 %v620, %v621
      %v623 = vrot.slane %v622, 2
      %v624 = vadd.f32 %v622, %v623
      %v625 = vrot.slane %v624, 1
      %v626 = vadd.f32 %v624, %v625
      %v627 = vadd.f32 %v435, %v626
      %v628 = vmul.f32 %v609, %v609
      %v629 = vmul.f32 %v614, %v614
      %v630 = vadd.f32 %v628, %v629
      %v631 = vrot.slane %v630, 4
      %v632 = vadd.f32 %v630, %v631
      %v633 = vrot.slane %v632, 2
      %v634 = vadd.f32 %v632, %v633
      %v635 = vrot.slane %v634, 1
      %v636 = vadd.f32 %v634, %v635
      %v637 = vadd.f32 %v445, %v636
      %v638 = vld [vmem:[%s1 + $0x8] sm:$0x1]
      %v639 = vlaneseq
      %v640 = vshrl.u32 %v639, 7
      %v641 = vsub.s32 0, %v640
      %v642 = vrot.slane %v638, %v641
      %v643 = vmul.f32 %v254, %v642
      %v644 = vmul.f32 %v255, %v642
      %v645 = vmul.f32 %v256, %v642
      %v646 = vadd.f32 %v643, 0.0
      %v647 = vadd.f32 %v644, 0.0
      %v648 = vadd.f32 %v645, 0.0
      %v649 = vld [vmem:[%s1 + $0x9] sm:$0x1]
      %v650 = vlaneseq
      %v651 = vshrl.u32 %v650, 7
      %v652 = vsub.s32 0, %v651
      %v653 = vrot.slane %v649, %v652
      %655 = vrot.lane.b32.xlu0 %v653, 4
      %v656 = vpop.permute.xlu0 %655
      %v658 = vmul.f32 %v254, %v656
      %v659 = vmul.f32 %v255, %v656
      %v660 = vmul.f32 %v256, %v656
      %664 = vrot.lane.b32.xlu0 %v658, 124
      %v665 = vpop.permute.xlu0 %664
      %666 = vrot.lane.b32.xlu0 %v659, 124
      %v667 = vpop.permute.xlu0 %666
      %668 = vrot.lane.b32.xlu0 %v660, 124
      %v669 = vpop.permute.xlu0 %668
      %v673 = vadd.f32 %v646, %v665
      %v674 = vadd.f32 %v647, %v667
      %v675 = vadd.f32 %v648, %v669
      %v676 = vld [vmem:[%s1 + $0xa] sm:$0x1]
      %v677 = vlaneseq
      %v678 = vshrl.u32 %v677, 7
      %v679 = vsub.s32 0, %v678
      %v680 = vrot.slane %v676, %v679
      %v681 = vmul.f32 %v254, %v680
      %v682 = vmul.f32 %v255, %v680
      %v683 = vmul.f32 %v256, %v680
      %v687 = vrot.slane %v681, 1
      %v688 = vrot.slane %v682, 1
      %v689 = vsel %vm306, %v687, %v688
      %v690 = vrot.slane %v683, 1
      %v691 = vsel %vm306, %v688, %v690
      %v695 = vadd.f32 %v673, %v689
      %v696 = vadd.f32 %v674, %v691
      %v697 = vadd.f32 %v675, %v690
      %v698 = vld [vmem:[%s1 + $0xb] sm:$0x1]
      %v699 = vlaneseq
      %v700 = vshrl.u32 %v699, 7
      %v701 = vsub.s32 0, %v700
      %v702 = vrot.slane %v698, %v701
      %704 = vrot.lane.b32.xlu0 %v702, 4
      %v705 = vpop.permute.xlu0 %704
      %v707 = vmul.f32 %v254, %v705
      %v708 = vmul.f32 %v255, %v705
      %v709 = vmul.f32 %v256, %v705
      %v713 = vrot.slane %v707, 1
      %v714 = vrot.slane %v708, 1
      %v715 = vsel %vm306, %v713, %v714
      %v716 = vrot.slane %v709, 1
      %v717 = vsel %vm306, %v714, %v716
      %718 = vrot.lane.b32.xlu0 %v715, 124
      %v719 = vpop.permute.xlu0 %718
      %720 = vrot.lane.b32.xlu0 %v717, 124
      %v721 = vpop.permute.xlu0 %720
      %722 = vrot.lane.b32.xlu0 %v716, 124
      %v723 = vpop.permute.xlu0 %722
      %v727 = vadd.f32 %v695, %v719
      %v728 = vadd.f32 %v696, %v721
      %v729 = vadd.f32 %v697, %v723
      %v733 = vrot.slane %v727, 1
      %v734 = vrot.slane %v728, 1
      %v735 = vsel %vm306, %v733, %v734
      %v736 = vrot.slane %v729, 1
      %v737 = vsel %vm306, %v734, %v736
      %v738 = vsel %vm344, %v735, 0
      %v740 = vsel %vm344, %v737, 0
      %742 = vmatprep.subr.mxu0 0.0
      %743 = vmatpush1.msra.mxu0 %v257
      %744 = vmatprep.subr.mxu0 0.0
      %745 = vmatpush1.msra.mxu0 %v258
      %746 = vmatprep.subr.mxu0 0.0
      %747 = vmatpush1.msra.mxu0 %v259
      %748 = vmatprep.subr.mxu0 0.0
      %749 = vmatpush1.msra.mxu0 %v260
      %750 = vmatprep.subr.mxu0 0.0
      %751 = vmatpush1.msra.mxu0 %v261
      %752 = vmatprep.subr.mxu0 0.0
      %753 = vmatpush1.msra.mxu0 %v262
      %754 = vmatprep.subr.mxu0 0.0
      %755 = vmatpush1.msra.mxu0 %v263
      %756 = vmatprep.subr.mxu0 0.0
      %757 = vmatpush1.msra.mxu0 %v264
      %758 = vmatprep.subr.mxu0 0.0
      %759 = vmatpush1.msra.mxu0 0.0
      %760 = vmatprep.subr.mxu0 0.0
      %761 = vmatpush1.msra.mxu0 0.0
      %762 = vmatprep.subr.mxu0 0.0
      %763 = vmatpush1.msra.mxu0 0.0
      %764 = vmatprep.subr.mxu0 0.0
      %765 = vmatpush1.msra.mxu0 0.0
      %766 = vmatprep.subr.mxu0 0.0
      %767 = vmatpush1.msra.mxu0 0.0
      %768 = vmatprep.subr.mxu0 0.0
      %769 = vmatpush1.msra.mxu0 0.0
      %770 = vmatprep.subr.mxu0 0.0
      %771 = vmatpush1.msra.mxu0 0.0
      %772 = vmatprep.subr.mxu0 0.0
      %773 = vmatpush1.msra.mxu0 0.0
      %774 = vmatprep.subr.mxu0 0.0
      %775 = vmatpush1.msra.mxu0 0.0
      %776 = vmatprep.subr.mxu0 0.0
      %777 = vmatpush1.msra.mxu0 0.0
      %778 = vmatprep.subr.mxu0 0.0
      %779 = vmatpush1.msra.mxu0 0.0
      %780 = vmatprep.subr.mxu0 0.0
      %781 = vmatpush1.msra.mxu0 0.0
      %782 = vmatprep.subr.mxu0 0.0
      %783 = vmatpush1.msra.mxu0 0.0
      %784 = vmatprep.subr.mxu0 0.0
      %785 = vmatpush1.msra.mxu0 0.0
      %786 = vmatprep.subr.mxu0 0.0
      %787 = vmatpush1.msra.mxu0 0.0
      %788 = vmatprep.subr.mxu0 0.0
      %789 = vmatpush1.msra.mxu0 0.0
      %790 = vmatprep.subr.mxu0 0.0
      %791 = vmatpush1.msra.mxu0 0.0
      %792 = vmatprep.subr.mxu0 0.0
      %793 = vmatpush1.msra.mxu0 0.0
      %794 = vmatprep.subr.mxu0 0.0
      %795 = vmatpush1.msra.mxu0 0.0
      %796 = vmatprep.subr.mxu0 0.0
      %797 = vmatpush1.msra.mxu0 0.0
      %798 = vmatprep.subr.mxu0 0.0
      %799 = vmatpush1.msra.mxu0 0.0
      %800 = vmatprep.subr.mxu0 0.0
      %801 = vmatpush1.msra.mxu0 0.0
      %802 = vmatprep.subr.mxu0 0.0
      %803 = vmatpush1.msra.mxu0 0.0
      %804 = vmatprep.subr.mxu0 0.0
      %805 = vmatpush1.msra.mxu0 0.0
      %806 = vmatprep.mubr.f32.mxu0 0.0
      %807 = vmatmul.mubr.f32.gmra.mrb[0].mxu0 %v738
      %v808 = vpop.f32.mrb[0].mxu0
      %v809 = vadd.f32 0.0, %v808
      %v810 = vpop.f32.mrb[0].mxu0
      %811 = vmatprep.mubr.f32.mxu0 0.0
      %812 = vmatmul.mubr.f32.gmra.mrb[0].mxu0 %v740
      %v813 = vpop.f32.mrb[0].mxu0
      %v814 = vadd.f32 0.0, %v813
      %v815 = vpop.f32.mrb[0].mxu0
      %816 = vdwg.mxu0
      %s817 = scalar_lea.vmem %s245, 32
      %818 = vst [vmem:[%s817] sm:$0xff] %v809
      %819 = vst [vmem:[%s817 + $0x8] sm:$0xff] %v814
      %v820 = vadd.f32 %v809, %v814
      %v821 = vrot.slane %v820, 4
      %v822 = vadd.f32 %v820, %v821
      %v823 = vrot.slane %v822, 2
      %v824 = vadd.f32 %v822, %v823
      %v825 = vrot.slane %v824, 1
      %v826 = vadd.f32 %v824, %v825
      %v827 = vadd.f32 %v627, %v826
      %v828 = vmul.f32 %v809, %v809
      %v829 = vmul.f32 %v814, %v814
      %v830 = vadd.f32 %v828, %v829
      %v831 = vrot.slane %v830, 4
      %v832 = vadd.f32 %v830, %v831
      %v833 = vrot.slane %v832, 2
      %v834 = vadd.f32 %v832, %v833
      %v835 = vrot.slane %v834, 1
      %v836 = vadd.f32 %v834, %v835
      %v837 = vadd.f32 %v637, %v836
      %v838 = vld [vmem:[%s1 + $0xc] sm:$0x1]
      %v839 = vlaneseq
      %v840 = vshrl.u32 %v839, 7
      %v841 = vsub.s32 0, %v840
      %v842 = vrot.slane %v838, %v841
      %844 = vrot.lane.b32.xlu0 %v842, 4
      %v845 = vpop.permute.xlu0 %844
      %v847 = vmul.f32 %v254, %v845
      %v848 = vmul.f32 %v255, %v845
      %v849 = vmul.f32 %v256, %v845
      %v850 = vadd.f32 %v847, 0.0
      %v851 = vadd.f32 %v848, 0.0
      %v852 = vadd.f32 %v849, 0.0
      %v853 = vld [vmem:[%s1 + $0xd] sm:$0x1]
      %v854 = vlaneseq
      %v855 = vshrl.u32 %v854, 7
      %v856 = vsub.s32 0, %v855
      %v857 = vrot.slane %v853, %v856
      %859 = vrot.lane.b32.xlu0 %v857, 8
      %v860 = vpop.permute.xlu0 %859
      %v862 = vmul.f32 %v254, %v860
      %v863 = vmul.f32 %v255, %v860
      %v864 = vmul.f32 %v256, %v860
      %868 = vrot.lane.b32.xlu0 %v862, 124
      %v869 = vpop.permute.xlu0 %868
      %870 = vrot.lane.b32.xlu0 %v863, 124
      %v871 = vpop.permute.xlu0 %870
      %872 = vrot.lane.b32.xlu0 %v864, 124
      %v873 = vpop.permute.xlu0 %872
      %v877 = vadd.f32 %v850, %v869
      %v878 = vadd.f32 %v851, %v871
      %v879 = vadd.f32 %v852, %v873
      %v880 = vld [vmem:[%s1 + $0xe] sm:$0x1]
      %v881 = vlaneseq
      %v882 = vshrl.u32 %v881, 7
      %v883 = vsub.s32 0, %v882
      %v884 = vrot.slane %v880, %v883
      %886 = vrot.lane.b32.xlu0 %v884, 4
      %v887 = vpop.permute.xlu0 %886
      %v889 = vmul.f32 %v254, %v887
      %v890 = vmul.f32 %v255, %v887
      %v891 = vmul.f32 %v256, %v887
      %v895 = vrot.slane %v889, 1
      %v896 = vrot.slane %v890, 1
      %v897 = vsel %vm306, %v895, %v896
      %v898 = vrot.slane %v891, 1
      %v899 = vsel %vm306, %v896, %v898
      %v903 = vadd.f32 %v877, %v897
      %v904 = vadd.f32 %v878, %v899
      %v905 = vadd.f32 %v879, %v898
      %v906 = vld [vmem:[%s1 + $0xf] sm:$0x1]
      %v907 = vlaneseq
      %v908 = vshrl.u32 %v907, 7
      %v909 = vsub.s32 0, %v908
      %v910 = vrot.slane %v906, %v909
      %912 = vrot.lane.b32.xlu0 %v910, 8
      %v913 = vpop.permute.xlu0 %912
      %v915 = vmul.f32 %v254, %v913
      %v916 = vmul.f32 %v255, %v913
      %v917 = vmul.f32 %v256, %v913
      %v921 = vrot.slane %v915, 1
      %v922 = vrot.slane %v916, 1
      %v923 = vsel %vm306, %v921, %v922
      %v924 = vrot.slane %v917, 1
      %v925 = vsel %vm306, %v922, %v924
      %926 = vrot.lane.b32.xlu0 %v923, 124
      %v927 = vpop.permute.xlu0 %926
      %928 = vrot.lane.b32.xlu0 %v925, 124
      %v929 = vpop.permute.xlu0 %928
      %930 = vrot.lane.b32.xlu0 %v924, 124
      %v931 = vpop.permute.xlu0 %930
      %v935 = vadd.f32 %v903, %v927
      %v936 = vadd.f32 %v904, %v929
      %v937 = vadd.f32 %v905, %v931
      %v941 = vrot.slane %v935, 1
      %v942 = vrot.slane %v936, 1
      %v943 = vsel %vm306, %v941, %v942
      %v944 = vrot.slane %v937, 1
      %v945 = vsel %vm306, %v942, %v944
      %946 = vrot.lane.b32.xlu0 %v943, 124
      %v947 = vpop.permute.xlu0 %946
      %948 = vrot.lane.b32.xlu0 %v945, 124
      %v949 = vpop.permute.xlu0 %948
      %v950 = vsel %vm344, %v947, 0
      %v952 = vsel %vm344, %v949, 0
      %954 = vmatprep.subr.mxu0 0.0
      %955 = vmatpush1.msra.mxu0 %v257
      %956 = vmatprep.subr.mxu0 0.0
      %957 = vmatpush1.msra.mxu0 %v258
      %958 = vmatprep.subr.mxu0 0.0
      %959 = vmatpush1.msra.mxu0 %v259
      %960 = vmatprep.subr.mxu0 0.0
      %961 = vmatpush1.msra.mxu0 %v260
      %962 = vmatprep.subr.mxu0 0.0
      %963 = vmatpush1.msra.mxu0 %v261
      %964 = vmatprep.subr.mxu0 0.0
      %965 = vmatpush1.msra.mxu0 %v262
      %966 = vmatprep.subr.mxu0 0.0
      %967 = vmatpush1.msra.mxu0 %v263
      %968 = vmatprep.subr.mxu0 0.0
      %969 = vmatpush1.msra.mxu0 %v264
      %970 = vmatprep.subr.mxu0 0.0
      %971 = vmatpush1.msra.mxu0 0.0
      %972 = vmatprep.subr.mxu0 0.0
      %973 = vmatpush1.msra.mxu0 0.0
      %974 = vmatprep.subr.mxu0 0.0
      %975 = vmatpush1.msra.mxu0 0.0
      %976 = vmatprep.subr.mxu0 0.0
      %977 = vmatpush1.msra.mxu0 0.0
      %978 = vmatprep.subr.mxu0 0.0
      %979 = vmatpush1.msra.mxu0 0.0
      %980 = vmatprep.subr.mxu0 0.0
      %981 = vmatpush1.msra.mxu0 0.0
      %982 = vmatprep.subr.mxu0 0.0
      %983 = vmatpush1.msra.mxu0 0.0
      %984 = vmatprep.subr.mxu0 0.0
      %985 = vmatpush1.msra.mxu0 0.0
      %986 = vmatprep.subr.mxu0 0.0
      %987 = vmatpush1.msra.mxu0 0.0
      %988 = vmatprep.subr.mxu0 0.0
      %989 = vmatpush1.msra.mxu0 0.0
      %990 = vmatprep.subr.mxu0 0.0
      %991 = vmatpush1.msra.mxu0 0.0
      %992 = vmatprep.subr.mxu0 0.0
      %993 = vmatpush1.msra.mxu0 0.0
      %994 = vmatprep.subr.mxu0 0.0
      %995 = vmatpush1.msra.mxu0 0.0
      %996 = vmatprep.subr.mxu0 0.0
      %997 = vmatpush1.msra.mxu0 0.0
      %998 = vmatprep.subr.mxu0 0.0
      %999 = vmatpush1.msra.mxu0 0.0
      %1000 = vmatprep.subr.mxu0 0.0
      %1001 = vmatpush1.msra.mxu0 0.0
      %1002 = vmatprep.subr.mxu0 0.0
      %1003 = vmatpush1.msra.mxu0 0.0
      %1004 = vmatprep.subr.mxu0 0.0
      %1005 = vmatpush1.msra.mxu0 0.0
      %1006 = vmatprep.subr.mxu0 0.0
      %1007 = vmatpush1.msra.mxu0 0.0
      %1008 = vmatprep.subr.mxu0 0.0
      %1009 = vmatpush1.msra.mxu0 0.0
      %1010 = vmatprep.subr.mxu0 0.0
      %1011 = vmatpush1.msra.mxu0 0.0
      %1012 = vmatprep.subr.mxu0 0.0
      %1013 = vmatpush1.msra.mxu0 0.0
      %1014 = vmatprep.subr.mxu0 0.0
      %1015 = vmatpush1.msra.mxu0 0.0
      %1016 = vmatprep.subr.mxu0 0.0
      %1017 = vmatpush1.msra.mxu0 0.0
      %1018 = vmatprep.mubr.f32.mxu0 0.0
      %1019 = vmatmul.mubr.f32.gmra.mrb[0].mxu0 %v950
      %v1020 = vpop.f32.mrb[0].mxu0
      %v1021 = vadd.f32 0.0, %v1020
      %v1022 = vpop.f32.mrb[0].mxu0
      %1023 = vmatprep.mubr.f32.mxu0 0.0
      %1024 = vmatmul.mubr.f32.gmra.mrb[0].mxu0 %v952
      %v1025 = vpop.f32.mrb[0].mxu0
      %v1026 = vadd.f32 0.0, %v1025
      %v1027 = vpop.f32.mrb[0].mxu0
      %1028 = vdwg.mxu0
      %s1029 = scalar_lea.vmem %s245, 48
      %1030 = vst [vmem:[%s1029] sm:$0xff] %v1021
      %1031 = vst [vmem:[%s1029 + $0x8] sm:$0xff] %v1026
      %v1032 = vadd.f32 %v1021, %v1026
      %v1033 = vrot.slane %v1032, 4
      %v1034 = vadd.f32 %v1032, %v1033
      %v1035 = vrot.slane %v1034, 2
      %v1036 = vadd.f32 %v1034, %v1035
      %v1037 = vrot.slane %v1036, 1
      %v1038 = vadd.f32 %v1036, %v1037
      %v1039 = vadd.f32 %v827, %v1038
      %v1040 = vmul.f32 %v1021, %v1021
      %v1041 = vmul.f32 %v1026, %v1026
      %v1042 = vadd.f32 %v1040, %v1041
      %v1043 = vrot.slane %v1042, 4
      %v1044 = vadd.f32 %v1042, %v1043
      %v1045 = vrot.slane %v1044, 2
      %v1046 = vadd.f32 %v1044, %v1045
      %v1047 = vrot.slane %v1046, 1
      %v1048 = vadd.f32 %v1046, %v1047
      %v1049 = vadd.f32 %v837, %v1048
      %vm1050 = vcmask 1040384
      %v1051 = vsel %vm1050, %v1039, %v1049
      %vm1052 = vcmask 1041408
      %v1053 = vsel %vm1052, %v1051, 0.0
      %1054 = vst [vmem:[%s253] sm:$0xff] %v1053
      %s1055 = smul.u32 2, %s21
      %p1056 = scmp.lt.s32.totalorder %s20, 1
      %s1057 = scalar_select %p1056, %s20, 1
      %p1058 = scmp.lt.s32.totalorder %s1055, 1
      %s1059 = scalar_select %p1058, %s1055, 1
      %s1060 = smul.addr %s1057, 8
      %s1061 = sadd.s32 %s1059, %s1060
      %s1062 = smul.addr %s1061, 8
      %s1063 = scalar_lea.vmem %s3, %s1062
      %p1064 = scmp.lt.s32.totalorder %s20, 1
      %s1065 = scalar_select %p1064, %s20, 1
      %p1066 = scmp.lt.s32.totalorder %s21, 0
      %s1067 = scalar_select %p1066, %s21, 0
      %s1068 = sadd.s32 %s1067, %s1065
      %s1069 = smul.addr %s1068, 8
      %s1070 = scalar_lea.vmem %s4, %s1069
      // Predicated region
      $region33: #{ds_basic_deconv_forward.1} parent=31 // pred_check
        %p1071 = pneg %p118
      $region34: #{ds_basic_deconv_forward.1} parent=31 // pred_check_branch
        %1073 = sbr.rel (%p1071) target = $region36
      $region35: #{ds_basic_deconv_forward.1} parent=31 // pred_region
        %s1074 = smul.u32 2, %s21
      $region36: #{ds_basic_deconv_forward.1} parent=31 // pred_fallthru
        _
      // Predicated region
      $region37: #{ds_basic_deconv_forward.1} parent=31 // pred_check
        %p1075 = pneg %p146
      $region38: #{ds_basic_deconv_forward.1} parent=31 // pred_check_branch
        %1077 = sbr.rel (%p1075) target = $region40
      $region39: #{ds_basic_deconv_forward.1} parent=31 // pred_region
        _
      $region40: #{ds_basic_deconv_forward.1} parent=31 // pred_fallthru
        _
    $region32: #{ds_basic_deconv_forward.1} parent=5 // pred_fallthru
      _
    %p1078 = scmp.le.s32.totalorder 2, %s11
    // Predicated region
    $region41: #{ds_basic_deconv_forward.1} parent=5 // pred_check
      %p1079 = pneg %p1078
    $region42: #{ds_basic_deconv_forward.1} parent=5 // pred_check_branch
      %1081 = sbr.rel (%p1079) target = $region44
    $region43: #{ds_basic_deconv_forward.1} parent=5 // pred_region
      %s1082 = ssub.s32 %s11, 2
      // Predicated region
      $region45: #{ds_basic_deconv_forward.1} parent=43 // pred_check
        %p1083 = pneg %p124
      $region46: #{ds_basic_deconv_forward.1} parent=43 // pred_check_branch
        %1085 = sbr.rel (%p1083) target = $region48
      $region47: #{ds_basic_deconv_forward.1} parent=43 // pred_region
        %s1086 = smul.u32 2, %s23
        %p1087 = scmp.lt.s32.totalorder %s22, 1
        %s1088 = scalar_select %p1087, %s22, 1
        %p1089 = scmp.lt.s32.totalorder %s1086, 1
        %s1090 = scalar_select %p1089, %s1086, 1
        %s1091 = smul.addr %s1088, 8
        %s1092 = sadd.s32 %s1090, %s1091
        %s1093 = smul.addr %s1092, 8
        %s1094 = scalar_lea.vmem %s3, %s1093
      $region48: #{ds_basic_deconv_forward.1} parent=43 // pred_fallthru
        _
      // Predicated region
      $region49: #{ds_basic_deconv_forward.1} parent=43 // pred_check
        %p1095 = pneg %p152
      $region50: #{ds_basic_deconv_forward.1} parent=43 // pred_check_branch
        %1097 = sbr.rel (%p1095) target = $region52
      $region51: #{ds_basic_deconv_forward.1} parent=43 // pred_region
        %p1098 = scmp.lt.s32.totalorder %s22, 1
        %s1099 = scalar_select %p1098, %s22, 1
        %p1100 = scmp.lt.s32.totalorder %s23, 0
        %s1101 = scalar_select %p1100, %s23, 0
        %s1102 = sadd.s32 %s1101, %s1099
        %s1103 = smul.addr %s1102, 8
        %s1104 = scalar_lea.vmem %s4, %s1103
      $region52: #{ds_basic_deconv_forward.1} parent=43 // pred_fallthru
        _
    $region44: #{ds_basic_deconv_forward.1} parent=5 // pred_fallthru
      _
  $region6: #{ds_basic_deconv_forward.1} parent=0 // loop_footer
    %s15 = sadd.s32 1, %s11
  $region7: #{ds_basic_deconv_forward.1} parent=0 // loop_footer_branch
    %10 = sbr.rel target = $region3
  $region8: #{ds_basic_deconv_forward.1} parent=0 // loop_exit
    _

</llo_original>
